<compile_context>
chip_gen: v5e
topology: v5e:2x2
jax: 0.10.0
libtpu: 0.0.40
codegen_flags: <defaults>
</compile_context>

<pallas_src>
from functools import partial

import jax
import jax.numpy as jnp
from jax import lax
from jax.experimental import pallas as pl
from jax.experimental.pallas import tpu as pltpu


def _cond_to_laplacian_kernel(w_ref, base_ref, out_ref, *, symmetric_bases: bool):
    # w_ref:    SMEM (B, K)       f32   batch of weight vectors (whole array resident)
    # base_ref: VMEM (K, d, d)    f32   base matrices (shared, whole array resident)
    # out_ref:  VMEM (1, 2, d, d) f32   per-problem block: [0]=Laplacian, [1]=conductance
    b = pl.program_id(0)
    K, d, _ = base_ref.shape

    # K is small and static -> unrolled scalar-broadcast FMAs on the VPU.
    acc = jnp.zeros((d, d), dtype=jnp.float32)
    for k in range(K):
        acc = acc + w_ref[b, k] * base_ref[k]

    # If bases were pre-symmetrized at parameter-init time, acc is already
    # symmetric and the XLU transpose is skipped.
    cond = acc if symmetric_bases else 0.5 * (acc + acc.T)

    # fixed_weights @ vec(C) for the matrix built by generate_weight_matrix()
    # has the exact closed form: diag = rowsum(C), off-diag = -C.
    row_sum = jnp.sum(cond, axis=1, keepdims=True)          # (d, 1) XLU reduce
    rows = lax.broadcasted_iota(jnp.int32, (d, d), 0)
    cols = lax.broadcasted_iota(jnp.int32, (d, d), 1)
    lap = jnp.where(rows == cols, row_sum, -cond)            # VPU select

    out_ref[0, 0, :, :] = lap
    out_ref[0, 1, :, :] = cond


def _batched_call(w_bk, bases_f32, symmetric_bases: bool):
    B, K = w_bk.shape
    Kb, d, _ = bases_f32.shape
    assert K == Kb, "weights/base_matrices K mismatch"

    flops = B * (2 * K * d * d + 3 * d * d)                      # FMAs + sym + select
    bytes_accessed = 4 * (B * K + K * d * d + B * 2 * d * d)

    return pl.pallas_call(
        partial(_cond_to_laplacian_kernel, symmetric_bases=symmetric_bases),
        grid=(B,),
        out_shape=jax.ShapeDtypeStruct((B, 2, d, d), jnp.float32),
        in_specs=[
            pl.BlockSpec(memory_space=pltpu.MemorySpace.SMEM),   # weights: scalars in SMEM
            pl.BlockSpec(memory_space=pltpu.MemorySpace.VMEM),   # shared base matrices
        ],
        out_specs=pl.BlockSpec((1, 2, d, d), lambda b: (b, 0, 0, 0)),
        compiler_params=pltpu.CompilerParams(
            dimension_semantics=("parallel",),                   # independent problems
        ),
        cost_estimate=pl.CostEstimate(
            flops=flops, transcendentals=0, bytes_accessed=bytes_accessed),
    )(w_bk, bases_f32)


def prepare_base_matrices(base_matrices):
    """Call ONCE at parameter-init time (bases are fixed module parameters).

    Caches B_sym_k = 0.5 * (B_k + B_k^T) so the kernel can skip the in-kernel
    symmetrization; sum_k w_k * B_sym_k == 0.5*(sum_k w_k B_k + (sum_k w_k B_k)^T).
    """
    b = jnp.asarray(base_matrices, jnp.float32)
    return 0.5 * (b + jnp.transpose(b, (0, 2, 1)))


def conductance_to_laplacian(weights_vector, base_matrices, *, bases_presymmetrized=False):
    """Single-problem forward matching torch ConductanceToLaplacian.forward().

    Returns (graph_laplacian (d,d), conductance_matrix (d,d))."""
    K, d, _ = base_matrices.shape
    w = jnp.asarray(weights_vector, jnp.float32)
    assert w.size == K, "weights_vector must have K elements"
    out = _batched_call(w.reshape(1, K), base_matrices.astype(jnp.float32),
                        bases_presymmetrized)
    return out[0, 0], out[0, 1]


def conductance_to_laplacian_batched(weights_batch, base_matrices, *, bases_presymmetrized=False):
    """Batched forward: weights_batch (B, K) -> (laplacians (B,d,d), conductances (B,d,d))."""
    out = _batched_call(jnp.asarray(weights_batch, jnp.float32),
                        base_matrices.astype(jnp.float32),
                        bases_presymmetrized)
    return out[:, 0], out[:, 1]


def generate_weight_matrix(d):
    """JAX port of ConductanceToLaplacian.generate_weight_matrix (float32).

    Only used by the reference check; the kernel exploits its structure
    (diag = rowsum, off-diag = -C) directly. Keep this dense-matvec check in CI."""
    n = d * d
    W = -1.0 * jnp.eye(n, dtype=jnp.float32)
    rows = jnp.arange(0, n, d + 1)                                  # d diagonal positions
    cols = (jnp.arange(d) * d)[:, None] + jnp.arange(d)[None, :]    # row k -> cols k*d..k*d+d-1
    W = W.at[rows[:, None], cols].set(1.0)
    return W


if __name__ == "__main__":
    d = 16   # self.dimension
    K = 4    # number of base matrices
    B = 8    # batch of weight vectors for the batched path

    key = jax.random.PRNGKey(0)
    kb, kw, kwb = jax.random.split(key, 3)
    base_matrices = jax.random.uniform(kb, (K, d, d), dtype=jnp.float32)
    weights_vector = jax.random.uniform(kw, (K, 1), dtype=jnp.float32)   # ~ torch.rand(K, 1)
    weights_batch = jax.random.uniform(kwb, (B, K), dtype=jnp.float32)

    # Parameter-init-time cache (done once, outside the per-step call).
    base_sym = prepare_base_matrices(base_matrices)

    single_fn = jax.jit(conductance_to_laplacian, static_argnames=("bases_presymmetrized",))
    batched_fn = jax.jit(conductance_to_laplacian_batched, static_argnames=("bases_presymmetrized",))

    L, C = single_fn(weights_vector, base_sym, bases_presymmetrized=True)
    Lb, Cb = batched_fn(weights_batch, base_sym, bases_presymmetrized=True)
    jax.block_until_ready((L, C, Lb, Cb))

    # Pure-JAX reference of the original forward semantics (dense fixed_weights matvec).
    W_ref = generate_weight_matrix(d)

    C_ref = jnp.einsum("k,kij->ij", weights_vector.reshape(K), base_matrices)
    C_ref = 0.5 * (C_ref + C_ref.T)
    L_ref = (W_ref @ C_ref.reshape(-1, 1)).reshape(d, d)
    assert jnp.allclose(C, C_ref, atol=1e-5), "conductance mismatch"
    assert jnp.allclose(L, L_ref, atol=1e-5), "laplacian mismatch"

    Cb_ref = jnp.einsum("bk,kij->bij", weights_batch, base_matrices)
    Cb_ref = 0.5 * (Cb_ref + jnp.transpose(Cb_ref, (0, 2, 1)))
    Lb_ref = jnp.einsum("nm,bm->bn", W_ref, Cb_ref.reshape(B, d * d)).reshape(B, d, d)
    assert jnp.allclose(Cb, Cb_ref, atol=1e-5), "batched conductance mismatch"
    assert jnp.allclose(Lb, Lb_ref, atol=1e-5), "batched laplacian mismatch"

    print("KERNEL_OK")
</pallas_src>

<mosaic_0001>
module attributes {stable_mosaic.version = 11 : i64} {
  func.func @_cond_to_laplacian_kernel(%arg0: i32, %arg1: memref<1x4xf32, #tpu.memory_space<smem>>, %arg2: memref<4x16x16xf32, #tpu.memory_space<vmem>>, %arg3: memref<1x2x16x16xf32, #tpu.memory_space<vmem>>) attributes {dimension_semantics = [#tpu.dimension_semantics<parallel>], iteration_bounds = array<i64: 1>, scalar_prefetch = 0 : i64, scratch_operands = 0 : i64, tpu.core_type = #tpu.core_type<tc>, window_params = [{transform_indices = @transform_0, window_bounds = array<i64: 1, 4>}, {pipeline_mode = #tpu.pipeline_mode<synchronous>, transform_indices = @transform_1, window_bounds = array<i64: 4, 16, 16>}, {transform_indices = @transform_2, window_bounds = array<i64: 1, 2, 16, 16>}]} {
    %cst = arith.constant 0.000000e+00 : f32
    %0 = vector.broadcast %cst : f32 to vector<16x16xf32>
    %1 = arith.index_cast %arg0 : i32 to index
    %c0 = arith.constant 0 : index
    %2 = memref.load %arg1[%1, %c0] : memref<1x4xf32, #tpu.memory_space<smem>>
    %c0_0 = arith.constant 0 : index
    %c0_1 = arith.constant 0 : index
    %c0_2 = arith.constant 0 : index
    %3 = vector.load %arg2[%c0_0, %c0_1, %c0_2] : memref<4x16x16xf32, #tpu.memory_space<vmem>>, vector<1x16x16xf32>
    %4 = vector.shape_cast %3 : vector<1x16x16xf32> to vector<16x16xf32>
    %5 = vector.broadcast %2 : f32 to vector<16x16xf32>
    %6 = arith.mulf %5, %4 : vector<16x16xf32>
    %7 = arith.addf %0, %6 : vector<16x16xf32>
    %8 = arith.index_cast %arg0 : i32 to index
    %c1 = arith.constant 1 : index
    %9 = memref.load %arg1[%8, %c1] : memref<1x4xf32, #tpu.memory_space<smem>>
    %c1_3 = arith.constant 1 : index
    %c0_4 = arith.constant 0 : index
    %c0_5 = arith.constant 0 : index
    %10 = vector.load %arg2[%c1_3, %c0_4, %c0_5] : memref<4x16x16xf32, #tpu.memory_space<vmem>>, vector<1x16x16xf32>
    %11 = vector.shape_cast %10 : vector<1x16x16xf32> to vector<16x16xf32>
    %12 = vector.broadcast %9 : f32 to vector<16x16xf32>
    %13 = arith.mulf %12, %11 : vector<16x16xf32>
    %14 = arith.addf %7, %13 : vector<16x16xf32>
    %15 = arith.index_cast %arg0 : i32 to index
    %c2 = arith.constant 2 : index
    %16 = memref.load %arg1[%15, %c2] : memref<1x4xf32, #tpu.memory_space<smem>>
    %c2_6 = arith.constant 2 : index
    %c0_7 = arith.constant 0 : index
    %c0_8 = arith.constant 0 : index
    %17 = vector.load %arg2[%c2_6, %c0_7, %c0_8] : memref<4x16x16xf32, #tpu.memory_space<vmem>>, vector<1x16x16xf32>
    %18 = vector.shape_cast %17 : vector<1x16x16xf32> to vector<16x16xf32>
    %19 = vector.broadcast %16 : f32 to vector<16x16xf32>
    %20 = arith.mulf %19, %18 : vector<16x16xf32>
    %21 = arith.addf %14, %20 : vector<16x16xf32>
    %22 = arith.index_cast %arg0 : i32 to index
    %c3 = arith.constant 3 : index
    %23 = memref.load %arg1[%22, %c3] : memref<1x4xf32, #tpu.memory_space<smem>>
    %c3_9 = arith.constant 3 : index
    %c0_10 = arith.constant 0 : index
    %c0_11 = arith.constant 0 : index
    %24 = vector.load %arg2[%c3_9, %c0_10, %c0_11] : memref<4x16x16xf32, #tpu.memory_space<vmem>>, vector<1x16x16xf32>
    %25 = vector.shape_cast %24 : vector<1x16x16xf32> to vector<16x16xf32>
    %26 = vector.broadcast %23 : f32 to vector<16x16xf32>
    %27 = arith.mulf %26, %25 : vector<16x16xf32>
    %28 = arith.addf %21, %27 : vector<16x16xf32>
    %cst_12 = arith.constant dense<0.000000e+00> : vector<16xf32>
    %29 = vector.multi_reduction <add>, %28, %cst_12 [1] : vector<16x16xf32> to vector<16xf32>
    %30 = vector.shape_cast %29 : vector<16xf32> to vector<16x1xf32>
    %31 = tpu.iota {dimensions = array<i32: 0>} : vector<16x16xi32>
    %32 = tpu.iota {dimensions = array<i32: 1>} : vector<16x16xi32>
    %33 = arith.cmpi eq, %31, %32 : vector<16x16xi32>
    %cst_13 = arith.constant 0.000000e+00 : f32
    %34 = vector.broadcast %cst_13 : f32 to vector<16x16xf32>
    %35 = arith.subf %34, %28 : vector<16x16xf32>
    %36 = vector.shape_cast %30 : vector<16x1xf32> to vector<16x1xf32>
    %37 = vector.broadcast %36 : vector<16x1xf32> to vector<16x16xf32>
    %38 = arith.select %33, %37, %35 : vector<16x16xi1>, vector<16x16xf32>
    %c0_14 = arith.constant 0 : index
    %c0_15 = arith.constant 0 : index
    %c0_16 = arith.constant 0 : index
    %c0_17 = arith.constant 0 : index
    %39 = vector.load %arg3[%c0_14, %c0_15, %c0_16, %c0_17] : memref<1x2x16x16xf32, #tpu.memory_space<vmem>>, vector<1x1x16x16xf32>
    %40 = vector.shape_cast %39 : vector<1x1x16x16xf32> to vector<16x16xf32>
    %41 = vector.shape_cast %38 : vector<16x16xf32> to vector<1x1x16x16xf32>
    tpu.vector_store %arg3[%c0_14, %c0_15, %c0_16, %c0_17], %41 {strides = array<i32>} : memref<1x2x16x16xf32, #tpu.memory_space<vmem>>, vector<1x1x16x16xf32>,
    %c0_18 = arith.constant 0 : index
    %c1_19 = arith.constant 1 : index
    %c0_20 = arith.constant 0 : index
    %c0_21 = arith.constant 0 : index
    %42 = vector.load %arg3[%c0_18, %c1_19, %c0_20, %c0_21] : memref<1x2x16x16xf32, #tpu.memory_space<vmem>>, vector<1x1x16x16xf32>
    %43 = vector.shape_cast %42 : vector<1x1x16x16xf32> to vector<16x16xf32>
    %44 = vector.shape_cast %28 : vector<16x16xf32> to vector<1x1x16x16xf32>
    tpu.vector_store %arg3[%c0_18, %c1_19, %c0_20, %c0_21], %44 {strides = array<i32>} : memref<1x2x16x16xf32, #tpu.memory_space<vmem>>, vector<1x1x16x16xf32>,
    return
  }
  func.func @transform_0(%arg0: i32) -> (i32, i32) {
    %c0_i32 = arith.constant 0 : i32
    %c0_i32_0 = arith.constant 0 : i32
    %c0_i32_1 = arith.constant 0 : i32
    return %c0_i32, %c0_i32_0 : i32, i32
  }
  func.func @transform_1(%arg0: i32) -> (i32, i32, i32) {
    %c0_i32 = arith.constant 0 : i32
    %c0_i32_0 = arith.constant 0 : i32
    %c0_i32_1 = arith.constant 0 : i32
    %c0_i32_2 = arith.constant 0 : i32
    return %c0_i32, %c0_i32_0, %c0_i32_1 : i32, i32, i32
  }
  func.func @transform_2(%arg0: i32) -> (i32, i32, i32, i32) {
    %c0_i32 = arith.constant 0 : i32
    %c0_i32_0 = arith.constant 0 : i32
    %c0_i32_1 = arith.constant 0 : i32
    %c0_i32_2 = arith.constant 0 : i32
    return %arg0, %c0_i32, %c0_i32_0, %c0_i32_1 : i32, i32, i32, i32
  }
}

</mosaic_0001>

<llo_original>
// kernel: conductance_to_laplacian.1
$region0: #{conductance_to_laplacian.1}
  #allocation0 [shape = 'u32[]', space=smem, size = 0x4, offset = 0x4, fixed_abs, tag = 'smem constant byte address 0x4 - core index']
  #allocation1 [shape = 'u32[72,128]{1,0:T(1,128)}', space=vmem, size = 0x9000, scoped, tag = 'internal scratch']
  %s0 = inlined_call_operand.hbm [shape: f32[1,4], index: 0, kind: input, shape index: {}]
  %s1 = inlined_call_operand.hbm [shape: f32[4,16,16], index: 1, kind: input, shape index: {}]
  %s2 = inlined_call_operand.vmem [shape: f32[1,2,16,16], index: 2, kind: output, shape index: {}]
  %s3 = sld [smem:[#allocation0]]
  $region26: #{conductance_to_laplacian.1} parent=0
    _
  %s5 = ssub.s32 1, %s3
  %s6 = scalar_select 0, %s5, %s3
  $region1: #{conductance_to_laplacian.1} parent=0
    #allocation2 [shape = 'u8[512]{0}', space=smem, size = 0x200, scoped, tag = 'input window, operand 0, single buffered']
    #allocation3 [shape = 's32[1]{0}', space=sflag, size = 0x4, scoped, tag = 'scoped memory for conductance_to_laplacian.1']
    #allocation4 [shape = 's32[1]{0}', space=sflag, size = 0x4, scoped, tag = 'scoped memory for conductance_to_laplacian.1']
    #allocation5 [shape = 'u8[32768]{0}', space=vmem, size = 0x8000, scoped, tag = 'input window, operand 1, single buffered']
    %7 = vsyncpa [#allocation4], 0
    %8 = vsyncpa [#allocation3], 0
    // Predicated region
    $region2: #{conductance_to_laplacian.1} parent=1 // pred_check
      _
    $region3: #{conductance_to_laplacian.1} parent=1 // pred_check_branch
      %10 = sbr.rel (0) target = $region5
    $region4: #{conductance_to_laplacian.1} parent=1 // pred_region
      %12 = vsyncadd [#allocation4], 0
      %s14 = sshll.u32 %s0, 4
      %s15 = int_to_ptr.hbm [resolvable:$true] %s14
      %17 = dma.hbm_to_smem %s15, 16, [#allocation2], [#allocation4]
    $region5: #{conductance_to_laplacian.1} parent=1 // pred_fallthru
      _
    // Predicated region
    $region6: #{conductance_to_laplacian.1} parent=1 // pred_check
      _
    $region7: #{conductance_to_laplacian.1} parent=1 // pred_check_branch
      %19 = sbr.rel (0) target = $region9
    $region8: #{conductance_to_laplacian.1} parent=1 // pred_region
      %21 = vsyncadd [#allocation3], 0
      %s22 = sshll.u32 %s1, 4
      %s23 = int_to_ptr.hbm [resolvable:$true] %s22
      %s24 = sshll.u32 [#allocation5], 4
      %s25 = int_to_ptr.vmem [resolvable:$true] %s24
      %30 = dma.hbm_to_vmem [thread:$0]  %s23, 1024, %s25, [#allocation3], 128, 128, 8
    $region9: #{conductance_to_laplacian.1} parent=1 // pred_fallthru
      _
    // Predicated region
    $region10: #{conductance_to_laplacian.1} parent=1 // pred_check
      _
    $region11: #{conductance_to_laplacian.1} parent=1 // pred_check_branch
      %32 = sbr.rel (0) target = $region13
    $region12: #{conductance_to_laplacian.1} parent=1 // pred_region
      %34 = dma.done [#allocation4], 16
    $region13: #{conductance_to_laplacian.1} parent=1 // pred_fallthru
      _
    // Predicated region
    $region14: #{conductance_to_laplacian.1} parent=1 // pred_check
      _
    $region15: #{conductance_to_laplacian.1} parent=1 // pred_check_branch
      %36 = sbr.rel (0) target = $region17
    $region16: #{conductance_to_laplacian.1} parent=1 // pred_region
      %38 = dma.done [#allocation3], 1024
    $region17: #{conductance_to_laplacian.1} parent=1 // pred_fallthru
      _
    %39 = sfence
    %s40 = smul.u32 0, 128
    %s41 = sld [smem:[#allocation2 + %s40]]
    %v42 = vld [vmem:[#allocation5] sm:$0xff]
    %v43 = vld [vmem:[#allocation5 + $0x8] sm:$0xff]
    %v44 = vstv %s41
    %v45 = vmul.f32 %v44, %v42
    %v46 = vmul.f32 %v44, %v43
    %v47 = vadd.f32 %v45, 0.0
    %v48 = vadd.f32 %v46, 0.0
    %s49 = sadd.s32 %s40, 1
    %s50 = sld [smem:[#allocation2 + %s49]]
    %s51 = scalar_lea.vmem [#allocation5], 16
    %v52 = vld [vmem:[%s51] sm:$0xff]
    %v53 = vld [vmem:[%s51 + $0x8] sm:$0xff]
    %v54 = vstv %s50
    %v55 = vmul.f32 %v54, %v52
    %v56 = vmul.f32 %v54, %v53
    %v57 = vadd.f32 %v47, %v55
    %v58 = vadd.f32 %v48, %v56
    %s59 = sadd.s32 %s40, 2
    %s60 = sld [smem:[#allocation2 + %s59]]
    %s61 = scalar_lea.vmem [#allocation5], 32
    %v62 = vld [vmem:[%s61] sm:$0xff]
    %v63 = vld [vmem:[%s61 + $0x8] sm:$0xff]
    %v64 = vstv %s60
    %v65 = vmul.f32 %v64, %v62
    %v66 = vmul.f32 %v64, %v63
    %v67 = vadd.f32 %v57, %v65
    %v68 = vadd.f32 %v58, %v66
    %s69 = sadd.s32 %s40, 3
    %s70 = sld [smem:[#allocation2 + %s69]]
    %s71 = scalar_lea.vmem [#allocation5], 48
    %v72 = vld [vmem:[%s71] sm:$0xff]
    %v73 = vld [vmem:[%s71 + $0x8] sm:$0xff]
    %v74 = vstv %s70
    %v75 = vmul.f32 %v74, %v72
    %v76 = vmul.f32 %v74, %v73
    %v77 = vadd.f32 %v67, %v75
    %v78 = vadd.f32 %v68, %v76
    %vm79 = vcmask 130048
    %v80 = vsel %vm79, %v77, 0.0
    %81 = vadd.xlane.f32.xlu0 %v80
    %v82 = vpop.xlane.xlu0 %81
    %v83 = vsel %vm79, %v78, 0.0
    %84 = vadd.xlane.f32.xlu0 %v83
    %v85 = vpop.xlane.xlu0 %84
    %v86 = vlaneseq
    %v87 = vshrl.u32 %v86, 7
    %v88 = vadd.s32 %v87, 8
    %v89 = vlaneseq
    %v90 = vand.u32 %v89, 127
    %vm91 = vcmp.eq.s32.totalorder %v87, %v90
    %vm92 = vcmp.eq.s32.totalorder %v88, %v90
    %v93 = vsub.f32 0.0, %v77
    %v94 = vsub.f32 0.0, %v78
    %v95 = vsel %vm91, %v82, %v93
    %v96 = vsel %vm92, %v85, %v94
    %97 = vst.msk [vmem:[%s2] sm:$0xff] %vm79, %v95
    %98 = vst.msk [vmem:[%s2 + $0x8] sm:$0xff] %vm79, %v96
    %s99 = scalar_lea.vmem %s2, 16
    %100 = vst.msk [vmem:[%s99] sm:$0xff] %vm79, %v77
    %101 = vst.msk [vmem:[%s99 + $0x8] sm:$0xff] %vm79, %v78
    // Predicated region
    $region18: #{conductance_to_laplacian.1} parent=1 // pred_check
      _
    $region19: #{conductance_to_laplacian.1} parent=1 // pred_check_branch
      %103 = sbr.rel (0) target = $region21
    $region20: #{conductance_to_laplacian.1} parent=1 // pred_region
      _
    $region21: #{conductance_to_laplacian.1} parent=1 // pred_fallthru
      _
    // Predicated region
    $region22: #{conductance_to_laplacian.1} parent=1 // pred_check
      _
    $region23: #{conductance_to_laplacian.1} parent=1 // pred_check_branch
      %105 = sbr.rel (0) target = $region25
    $region24: #{conductance_to_laplacian.1} parent=1 // pred_region
      _
    $region25: #{conductance_to_laplacian.1} parent=1 // pred_fallthru
      _
    %106 = vsyncpa [#allocation3], 1
    %107 = vsyncpa [#allocation4], 1

</llo_original>
